<compile_context>
chip_gen: v7x
topology: tpu7x:2x2x1
jax: 0.10.0
libtpu: 0.0.40
codegen_flags: <defaults>
</compile_context>

<pallas_src>
import jax
import jax.numpy as jnp
from jax import lax
from jax.experimental import pallas as pl
from jax.experimental.pallas import tpu as pltpu

LANE = 128
SUBLANE = 8


def _round_up(x, m):
    return ((x + m - 1) // m) * m


def _vmem_limit_bytes():
    """Generation-aware VMEM limit (v5e/v6e: 128 MiB physical, v7x: 64 MiB)."""
    fallback = 64 * 1024 * 1024
    try:
        info = pltpu.get_tpu_info()
        phys = int(getattr(info, "vmem_capacity_bytes", 0))
        if phys <= 0:
            return fallback
        return min(phys * 3 // 4, 100 * 1024 * 1024)
    except Exception:
        return fallback


def _pick_batch_group(B, F):
    """Batch rows per lane group.

    Constraints: tB divides B; the output-block sublane dim tB is a multiple of
    8 (or tB == B); the lane width tB*F is a multiple of 128 (or the full B*F).
    Prefer >= 2 groups so both v7x TensorCores get work.
    """
    cands = [tb for tb in range(SUBLANE, B + 1, SUBLANE)
             if B % tb == 0 and (tb * F) % LANE == 0]
    if not cands:
        return B                      # single group, full (possibly ragged) batch
    multi = [tb for tb in cands if B // tb >= 2]
    pool = multi or cands
    small = [tb for tb in pool if tb <= 128]
    return max(small) if small else min(pool)


def _pick_seq_tile(S, lane_width, itemsize, resident_bytes, vmem_limit):
    """Largest multiple-of-8 sequence tile whose two double-buffered input
    blocks fit in what is left of the VMEM budget."""
    budget = max(vmem_limit - resident_bytes - (4 << 20), 1 << 20)
    per_row = 2 * 2 * lane_width * itemsize       # x_t + x_o, 2 pipeline buffers
    tS = budget // per_row
    if tS >= S:
        return S
    return int(max(SUBLANE, (tS // SUBLANE) * SUBLANE))


def div_encoder_kernel(
    ntiles_ref,            # SMEM (n_groups,) i32: # seq tiles holding data per group
    lens_ref,              # (1, tBF) i32 : per-lane sequence lengths
    x_t_ref, x_o_ref,      # (tS, tBF)    : lane-dense (seq, batch*feat) streams
    gather_ref,            # (tBF, F) f32 : 0/1 de-interleave matrix (j % F == f)
    w_l_ref, b_l_ref,      # (F, Hp), (1, Hp)
    w_o_ref, b_o_ref,      # (F, Hp), (1, Hp)
    w_d1_ref, b_d1_ref,    # (Hp, Dp), (1, Dp)
    w_d2_ref, b_d2_ref,    # (1, Dp), (1, 1)
    enc_ref,               # out (2, tB, Hp)   [0]=enc_l, [1]=enc_o
    disc_ref,              # out (2, tB, 128)  sigmoid logits broadcast over lanes
    acc_l_ref, acc_o_ref,  # scratch (1, tBF) f32 masked partial sums
):
    g = pl.program_id(0)
    s = pl.program_id(1)
    n_s = pl.num_programs(1)
    tS, tBF = x_t_ref.shape
    F = gather_ref.shape[1]
    tB = enc_ref.shape[1]

    @pl.when(s == 0)
    def _init():
        acc_l_ref[...] = jnp.zeros_like(acc_l_ref)
        acc_o_ref[...] = jnp.zeros_like(acc_o_ref)

    # ---- streaming phase: masked partial sums over the sequence axis --------
    # Skipped entirely for sequence tiles past the longest length in this batch
    # group (the clamped index_map also elides the DMA for those tiles).
    @pl.when(s < ntiles_ref[g])
    def _accumulate():
        pos = s * tS + lax.broadcasted_iota(jnp.int32, (tS, tBF), 0)
        valid = pos < lens_ref[...]                              # (tS, tBF) bool
        x_t = jnp.where(valid, x_t_ref[...].astype(jnp.float32), 0.0)
        x_o = jnp.where(valid, x_o_ref[...].astype(jnp.float32), 0.0)
        acc_l_ref[...] += jnp.sum(x_t, axis=0, keepdims=True)
        acc_o_ref[...] += jnp.sum(x_o, axis=0, keepdims=True)

    # ---- finalize: avg-pool -> linear encoders -> discriminator -------------
    @pl.when(s == n_s - 1)
    def _finalize():
        # Scale the lane-flat sums by 1/len and de-interleave them into (tB, F)
        # rows with one tiny MXU matmul (iota-built row selector x 0/1 gather
        # matrix) - no cross-lane reshape/relayout needed.
        inv_len = 1.0 / jnp.maximum(lens_ref[...].astype(jnp.float32), 1.0)
        lane = lax.broadcasted_iota(jnp.int32, (tB, tBF), 1)
        row_start = lax.broadcasted_iota(jnp.int32, (tB, tBF), 0) * F
        sel = jnp.where((lane >= row_start) & (lane < row_start + F),
                        inv_len, 0.0)                            # (tB, tBF)
        pooled_l = jnp.dot(acc_l_ref[...] * sel, gather_ref[...],
                           preferred_element_type=jnp.float32)   # (tB, F)
        pooled_o = jnp.dot(acc_o_ref[...] * sel, gather_ref[...],
                           preferred_element_type=jnp.float32)

        # linear encoders (dropout p=0.0 -> identity)
        enc_l = jnp.dot(pooled_l, w_l_ref[...],
                        preferred_element_type=jnp.float32) + b_l_ref[...]
        enc_o = jnp.dot(pooled_o, w_o_ref[...],
                        preferred_element_type=jnp.float32) + b_o_ref[...]
        enc_ref[0] = enc_l
        enc_ref[1] = enc_o

        # discriminator on torch.cat([enc_l, enc_o], dim=0): ONE layer-1 matmul
        cat = jnp.concatenate([enc_l, enc_o], axis=0)            # (2*tB, Hp)
        h = jnp.maximum(
            jnp.dot(cat, w_d1_ref[...],
                    preferred_element_type=jnp.float32) + b_d1_ref[...], 0.0)
        # (Dp -> 1) projection as VPU multiply + lane reduction (no 1-wide MXU op)
        logit = jnp.sum(h * w_d2_ref[...], axis=-1, keepdims=True) + b_d2_ref[...]
        sig = jax.nn.sigmoid(logit)                              # (2*tB, 1)
        disc_ref[0] = jnp.broadcast_to(sig[:tB], disc_ref.shape[1:])
        disc_ref[1] = jnp.broadcast_to(sig[tB:], disc_ref.shape[1:])


def div_encoder_forward(input_t, input_o, lengths, mask, params,
                        *, seq_tile=None, batch_tile=None):
    """DIVEncoder forward.  input_t/input_o: (S, B, F); lengths: (B,);
    mask: (B, S) prefix length mask.  Returns (enc_l, enc_o, disc_out,
    disc_labels) matching the PyTorch module."""
    S, B, F = input_t.shape
    H = params["w_l"].shape[1]
    D1 = params["w_d1"].shape[1]                     # 4 * H
    Hp = _round_up(H, LANE)
    Dp = _round_up(D1, LANE)
    BF = B * F

    # The module's mask is the prefix length mask (mask[b, s] = s < lengths[b]);
    # it is regenerated in-kernel from int32 `lengths`, removing an (S, B) HBM
    # stream.  Assumes lengths <= S (same contract as the PyTorch module).
    del mask

    # ---- lane-dense streaming layout: (S, B, F) -> (S, B*F), free reshape ----
    x_t2 = input_t.reshape(S, BF)
    x_o2 = input_o.reshape(S, BF)
    lens_i32 = lengths.astype(jnp.int32)
    lens_lane = jnp.repeat(lens_i32, F).reshape(1, BF)     # length of lane's batch row

    # ---- lane-aligned, zero-padded weights (tiny one-time wrapper ops) -------
    w_l = jnp.pad(params["w_l"], ((0, 0), (0, Hp - H)))
    b_l = jnp.pad(params["b_l"], ((0, 0), (0, Hp - H)))
    w_o = jnp.pad(params["w_o"], ((0, 0), (0, Hp - H)))
    b_o = jnp.pad(params["b_o"], ((0, 0), (0, Hp - H)))
    w_d1 = jnp.pad(params["w_d1"], ((0, Hp - H), (0, Dp - D1)))
    b_d1 = jnp.pad(params["b_d1"], ((0, 0), (0, Dp - D1)))
    w_d2 = jnp.pad(params["w_d2"].T, ((0, 0), (0, Dp - D1)))      # (1, Dp)
    b_d2 = params["b_d2"]                                         # (1, 1)

    # ---- tiling ---------------------------------------------------------------
    tB = batch_tile or _pick_batch_group(B, F)
    assert B % tB == 0, "batch_tile must divide the batch size"
    assert tB == B or (tB % SUBLANE == 0 and (tB * F) % LANE == 0), \
        "batch_tile must keep blocks (8,128)-aligned"
    n_groups = B // tB
    tBF = tB * F

    # 0/1 de-interleave matrix: gather[j, f] = (j % F == f)
    gather = (jnp.arange(tBF)[:, None] % F
              == jnp.arange(F)[None, :]).astype(jnp.float32)      # (tBF, F)

    vmem_limit = _vmem_limit_bytes()

    def pad_tile(r, c):            # f32 VMEM footprint of one (r, c) buffer
        return _round_up(max(r, 1), SUBLANE) * _round_up(max(c, 1), LANE) * 4

    weight_bytes = (2 * pad_tile(F, Hp) + 2 * pad_tile(1, Hp)
                    + pad_tile(Hp, Dp) + 2 * pad_tile(1, Dp) + pad_tile(1, 1)
                    + pad_tile(tBF, F))
    out_bytes = 2 * pad_tile(tB, Hp) + 2 * pad_tile(tB, LANE)
    lens_bytes = pad_tile(1, tBF)
    acc_bytes = 2 * pad_tile(1, tBF)
    resident = 2 * (weight_bytes + out_bytes + lens_bytes) + acc_bytes

    itemsize = jnp.dtype(input_t.dtype).itemsize
    tS = seq_tile or _pick_seq_tile(S, _round_up(tBF, LANE), itemsize,
                                    resident, vmem_limit)
    n_seq = pl.cdiv(S, tS)
    grid = (n_groups, n_seq)

    # number of sequence tiles that actually hold data, per batch group
    max_len = jnp.max(lens_i32.reshape(n_groups, tB), axis=1)
    ntiles = jnp.clip((max_len + tS - 1) // tS, 0, n_seq).astype(jnp.int32)

    def x_map(g, s, nt):       # clamp -> revisit previous block -> DMA is skipped
        return (jnp.minimum(s, jnp.maximum(nt[g] - 1, 0)), g)

    const2 = lambda g, s, nt: (0, 0)

    in_specs = [
        pl.BlockSpec((1, tBF), lambda g, s, nt: (0, g)),          # lens_lane
        pl.BlockSpec((tS, tBF), x_map),                           # x_t
        pl.BlockSpec((tS, tBF), x_map),                           # x_o
        pl.BlockSpec((tBF, F), const2),                           # gather
        pl.BlockSpec((F, Hp), const2), pl.BlockSpec((1, Hp), const2),   # encode_l
        pl.BlockSpec((F, Hp), const2), pl.BlockSpec((1, Hp), const2),   # encode_o
        pl.BlockSpec((Hp, Dp), const2), pl.BlockSpec((1, Dp), const2),  # disc L1
        pl.BlockSpec((1, Dp), const2), pl.BlockSpec((1, 1), const2),    # disc L2
    ]
    out_specs = [
        pl.BlockSpec((2, tB, Hp), lambda g, s, nt: (0, g, 0)),
        pl.BlockSpec((2, tB, LANE), lambda g, s, nt: (0, g, 0)),
    ]
    out_shape = [
        jax.ShapeDtypeStruct((2, B, Hp), jnp.float32),
        jax.ShapeDtypeStruct((2, B, LANE), jnp.float32),
    ]

    enc, disc = pl.pallas_call(
        div_encoder_kernel,
        grid_spec=pltpu.PrefetchScalarGridSpec(
            num_scalar_prefetch=1,
            grid=grid,
            in_specs=in_specs,
            out_specs=out_specs,
            scratch_shapes=[pltpu.VMEM((1, tBF), jnp.float32),
                            pltpu.VMEM((1, tBF), jnp.float32)]),
        out_shape=out_shape,
        compiler_params=pltpu.CompilerParams(
            dimension_semantics=("parallel", "arbitrary"),
            vmem_limit_bytes=int(vmem_limit)),
    )(ntiles, lens_lane, x_t2, x_o2, gather,
      w_l, b_l, w_o, b_o, w_d1, b_d1, w_d2, b_d2)

    enc_l = enc[0, :, :H]
    enc_o = enc[1, :, :H]
    disc_out = disc[:, :, 0].reshape(2 * B)       # [l rows..., o rows...] = torch.cat dim=0
    disc_labels = jnp.concatenate(
        [jnp.zeros((B,), jnp.float32), jnp.ones((B,), jnp.float32)], axis=0)
    return enc_l, enc_o, disc_out, disc_labels


def reference_forward(input_t, input_o, lengths, mask, params):
    """Pure-JAX reference mirroring the PyTorch semantics."""
    mask3 = mask.astype(jnp.float32)[:, :, None]                   # (B, S, 1)
    lens = lengths.astype(jnp.float32)[:, None]
    pool_l = jnp.sum(jnp.transpose(input_t, (1, 0, 2)) * mask3, axis=1) / lens
    pool_o = jnp.sum(jnp.transpose(input_o, (1, 0, 2)) * mask3, axis=1) / lens
    enc_l = pool_l @ params["w_l"] + params["b_l"][0]
    enc_o = pool_o @ params["w_o"] + params["b_o"][0]
    cat = jnp.concatenate([enc_l, enc_o], axis=0)
    h = jnp.maximum(cat @ params["w_d1"] + params["b_d1"][0], 0.0)
    disc = jax.nn.sigmoid(h @ params["w_d2"] + params["b_d2"][0])[:, 0]
    return enc_l, enc_o, disc


def init_params(key, in_size, out_size):
    ks = jax.random.split(key, 8)
    scale = 0.1
    return {
        "w_l":  scale * jax.random.normal(ks[0], (in_size, out_size), jnp.float32),
        "b_l":  scale * jax.random.normal(ks[1], (1, out_size), jnp.float32),
        "w_o":  scale * jax.random.normal(ks[2], (in_size, out_size), jnp.float32),
        "b_o":  scale * jax.random.normal(ks[3], (1, out_size), jnp.float32),
        "w_d1": scale * jax.random.normal(ks[4], (out_size, 4 * out_size), jnp.float32),
        "b_d1": scale * jax.random.normal(ks[5], (1, 4 * out_size), jnp.float32),
        "w_d2": scale * jax.random.normal(ks[6], (4 * out_size, 1), jnp.float32),
        "b_d2": scale * jax.random.normal(ks[7], (1, 1), jnp.float32),
    }


def _check(outs, refs, B, tag):
    enc_l, enc_o, disc_out, disc_labels = outs
    r_enc_l, r_enc_o, r_disc = refs
    assert jnp.allclose(enc_l, r_enc_l, atol=1e-4, rtol=1e-4), f"{tag}: enc_l mismatch"
    assert jnp.allclose(enc_o, r_enc_o, atol=1e-4, rtol=1e-4), f"{tag}: enc_o mismatch"
    assert jnp.allclose(disc_out, r_disc, atol=1e-4, rtol=1e-4), f"{tag}: disc mismatch"
    assert disc_out.shape == (2 * B,) and disc_labels.shape == (2 * B,)


if __name__ == "__main__":
    key = jax.random.PRNGKey(0)

    # ---- config 1: tiny smoke test (single group, single sequence tile) ------
    S, B, F, H = 8, 2, 16, 32
    k_t, k_o, k_p, k2 = jax.random.split(key, 4)
    input_t = jax.random.normal(k_t, (S, B, F), jnp.float32)
    input_o = jax.random.normal(k_o, (S, B, F), jnp.float32)
    lengths = jnp.array([8, 5], dtype=jnp.int32)
    mask = (jnp.arange(S)[None, :] < lengths[:, None]).astype(jnp.float32)
    params = init_params(k_p, F, H)

    outs = div_encoder_forward(input_t, input_o, lengths, mask, params)
    jax.block_until_ready(outs)
    _check(outs, reference_forward(input_t, input_o, lengths, mask, params), B, "cfg1")

    # ---- config 2: exercises batch groups, multiple sequence tiles and the
    #      ragged "skip fully-masked tiles" path -------------------------------
    S2, B2, F2, H2 = 40, 16, 16, 32
    k_t2, k_o2, k_p2, k_l2 = jax.random.split(k2, 4)
    input_t2 = jax.random.normal(k_t2, (S2, B2, F2), jnp.float32)
    input_o2 = jax.random.normal(k_o2, (S2, B2, F2), jnp.float32)
    lengths2 = jax.random.randint(k_l2, (B2,), 1, S2 + 1).astype(jnp.int32)
    mask2 = (jnp.arange(S2)[None, :] < lengths2[:, None]).astype(jnp.float32)
    params2 = init_params(k_p2, F2, H2)

    outs2 = div_encoder_forward(input_t2, input_o2, lengths2, mask2, params2,
                                seq_tile=8)
    jax.block_until_ready(outs2)
    _check(outs2, reference_forward(input_t2, input_o2, lengths2, mask2, params2),
           B2, "cfg2")

    print("KERNEL_OK")
</pallas_src>

<mosaic_0001>
module attributes {stable_mosaic.version = 11 : i64} {
  func.func @div_encoder_kernel(%arg0: i32, %arg1: i32, %arg2: memref<1xi32, #tpu.memory_space<smem>>, %arg3: memref<1x32xi32, #tpu.memory_space<vmem>>, %arg4: memref<8x32xf32, #tpu.memory_space<vmem>>, %arg5: memref<8x32xf32, #tpu.memory_space<vmem>>, %arg6: memref<32x16xf32, #tpu.memory_space<vmem>>, %arg7: memref<16x128xf32, #tpu.memory_space<vmem>>, %arg8: memref<1x128xf32, #tpu.memory_space<vmem>>, %arg9: memref<16x128xf32, #tpu.memory_space<vmem>>, %arg10: memref<1x128xf32, #tpu.memory_space<vmem>>, %arg11: memref<128x128xf32, #tpu.memory_space<vmem>>, %arg12: memref<1x128xf32, #tpu.memory_space<vmem>>, %arg13: memref<1x128xf32, #tpu.memory_space<vmem>>, %arg14: memref<1x1xf32, #tpu.memory_space<vmem>>, %arg15: memref<2x2x128xf32, #tpu.memory_space<vmem>>, %arg16: memref<2x2x128xf32, #tpu.memory_space<vmem>>, %arg17: memref<1x32xf32, #tpu.memory_space<vmem>>, %arg18: memref<1x32xf32, #tpu.memory_space<vmem>>) attributes {dimension_semantics = [#tpu.dimension_semantics<parallel>, #tpu.dimension_semantics<arbitrary>], iteration_bounds = array<i64: 1, 1>, scalar_prefetch = 1 : i64, scratch_operands = 2 : i64, tpu.core_type = #tpu.core_type<tc>, window_params = [{transform_indices = @transform_0, window_bounds = array<i64: 1, 32>}, {transform_indices = @transform_1, window_bounds = array<i64: 8, 32>}, {transform_indices = @transform_2, window_bounds = array<i64: 8, 32>}, {pipeline_mode = #tpu.pipeline_mode<synchronous>, transform_indices = @transform_3, window_bounds = array<i64: 32, 16>}, {pipeline_mode = #tpu.pipeline_mode<synchronous>, transform_indices = @transform_4, window_bounds = array<i64: 16, 128>}, {pipeline_mode = #tpu.pipeline_mode<synchronous>, transform_indices = @transform_5, window_bounds = array<i64: 1, 128>}, {pipeline_mode = #tpu.pipeline_mode<synchronous>, transform_indices = @transform_6, window_bounds = array<i64: 16, 128>}, {pipeline_mode = #tpu.pipeline_mode<synchronous>, transform_indices = @transform_7, window_bounds = array<i64: 1, 128>}, {pipeline_mode = #tpu.pipeline_mode<synchronous>, transform_indices = @transform_8, window_bounds = array<i64: 128, 128>}, {pipeline_mode = #tpu.pipeline_mode<synchronous>, transform_indices = @transform_9, window_bounds = array<i64: 1, 128>}, {pipeline_mode = #tpu.pipeline_mode<synchronous>, transform_indices = @transform_10, window_bounds = array<i64: 1, 128>}, {pipeline_mode = #tpu.pipeline_mode<synchronous>, transform_indices = @transform_11, window_bounds = array<i64: 1, 1>}, {transform_indices = @transform_12, window_bounds = array<i64: 2, 2, 128>}, {transform_indices = @transform_13, window_bounds = array<i64: 2, 2, 128>}]} {
    %c0_i32 = arith.constant 0 : i32
    %0 = arith.cmpi eq, %arg1, %c0_i32 : i32
    %1 = arith.extui %0 : i1 to i32
    %c0_i32_0 = arith.constant 0 : i32
    %2 = arith.cmpi ne, %1, %c0_i32_0 : i32
    scf.if %2 {
      %cst = arith.constant 0.000000e+00 : f32
      %11 = vector.broadcast %cst : f32 to vector<1x32xf32>
      %c0 = arith.constant 0 : index
      %c0_4 = arith.constant 0 : index
      %12 = vector.load %arg17[%c0, %c0_4] : memref<1x32xf32, #tpu.memory_space<vmem>>, vector<1x32xf32>
      tpu.vector_store %arg17[%c0, %c0_4], %11 {strides = array<i32>} : memref<1x32xf32, #tpu.memory_space<vmem>>, vector<1x32xf32>,
      %cst_5 = arith.constant 0.000000e+00 : f32
      %13 = vector.broadcast %cst_5 : f32 to vector<1x32xf32>
      %c0_6 = arith.constant 0 : index
      %c0_7 = arith.constant 0 : index
      %14 = vector.load %arg18[%c0_6, %c0_7] : memref<1x32xf32, #tpu.memory_space<vmem>>, vector<1x32xf32>
      tpu.vector_store %arg18[%c0_6, %c0_7], %13 {strides = array<i32>} : memref<1x32xf32, #tpu.memory_space<vmem>>, vector<1x32xf32>,
    } else {
    }
    %3 = arith.index_cast %arg0 : i32 to index
    %4 = memref.load %arg2[%3] : memref<1xi32, #tpu.memory_space<smem>>
    %5 = arith.cmpi slt, %arg1, %4 : i32
    %6 = arith.extui %5 : i1 to i32
    %c0_i32_1 = arith.constant 0 : i32
    %7 = arith.cmpi ne, %6, %c0_i32_1 : i32
    scf.if %7 {
      %c8_i32 = arith.constant 8 : i32
      %11 = arith.muli %arg1, %c8_i32 : i32
      %12 = tpu.iota {dimensions = array<i32: 0>} : vector<8x32xi32>
      %13 = vector.broadcast %11 : i32 to vector<8x32xi32>
      %14 = arith.addi %13, %12 : vector<8x32xi32>
      %c0 = arith.constant 0 : index
      %c0_4 = arith.constant 0 : index
      %15 = vector.load %arg3[%c0, %c0_4] : memref<1x32xi32, #tpu.memory_space<vmem>>, vector<1x32xi32>
      %16 = vector.broadcast %15 : vector<1x32xi32> to vector<8x32xi32>
      %17 = arith.cmpi slt, %14, %16 : vector<8x32xi32>
      %c0_5 = arith.constant 0 : index
      %c0_6 = arith.constant 0 : index
      %18 = vector.load %arg4[%c0_5, %c0_6] : memref<8x32xf32, #tpu.memory_space<vmem>>, vector<8x32xf32>
      %cst = arith.constant 0.000000e+00 : f32
      %19 = vector.broadcast %cst : f32 to vector<8x32xf32>
      %20 = arith.select %17, %18, %19 : vector<8x32xi1>, vector<8x32xf32>
      %c0_7 = arith.constant 0 : index
      %c0_8 = arith.constant 0 : index
      %21 = vector.load %arg5[%c0_7, %c0_8] : memref<8x32xf32, #tpu.memory_space<vmem>>, vector<8x32xf32>
      %cst_9 = arith.constant 0.000000e+00 : f32
      %22 = vector.broadcast %cst_9 : f32 to vector<8x32xf32>
      %23 = arith.select %17, %21, %22 : vector<8x32xi1>, vector<8x32xf32>
      %c0_10 = arith.constant 0 : index
      %c0_11 = arith.constant 0 : index
      %24 = vector.load %arg17[%c0_10, %c0_11] : memref<1x32xf32, #tpu.memory_space<vmem>>, vector<1x32xf32>
      %cst_12 = arith.constant dense<0.000000e+00> : vector<32xf32>
      %25 = vector.multi_reduction <add>, %20, %cst_12 [0] : vector<8x32xf32> to vector<32xf32>
      %26 = vector.shape_cast %25 : vector<32xf32> to vector<1x32xf32>
      %27 = arith.addf %24, %26 : vector<1x32xf32>
      %c0_13 = arith.constant 0 : index
      %c0_14 = arith.constant 0 : index
      %28 = vector.load %arg17[%c0_13, %c0_14] : memref<1x32xf32, #tpu.memory_space<vmem>>, vector<1x32xf32>
      tpu.vector_store %arg17[%c0_13, %c0_14], %27 {strides = array<i32>} : memref<1x32xf32, #tpu.memory_space<vmem>>, vector<1x32xf32>,
      %c0_15 = arith.constant 0 : index
      %c0_16 = arith.constant 0 : index
      %29 = vector.load %arg18[%c0_15, %c0_16] : memref<1x32xf32, #tpu.memory_space<vmem>>, vector<1x32xf32>
      %cst_17 = arith.constant dense<0.000000e+00> : vector<32xf32>
      %30 = vector.multi_reduction <add>, %23, %cst_17 [0] : vector<8x32xf32> to vector<32xf32>
      %31 = vector.shape_cast %30 : vector<32xf32> to vector<1x32xf32>
      %32 = arith.addf %29, %31 : vector<1x32xf32>
      %c0_18 = arith.constant 0 : index
      %c0_19 = arith.constant 0 : index
      %33 = vector.load %arg18[%c0_18, %c0_19] : memref<1x32xf32, #tpu.memory_space<vmem>>, vector<1x32xf32>
      tpu.vector_store %arg18[%c0_18, %c0_19], %32 {strides = array<i32>} : memref<1x32xf32, #tpu.memory_space<vmem>>, vector<1x32xf32>,
    } else {
    }
    %c0_i32_2 = arith.constant 0 : i32
    %8 = arith.cmpi eq, %arg1, %c0_i32_2 : i32
    %9 = arith.extui %8 : i1 to i32
    %c0_i32_3 = arith.constant 0 : i32
    %10 = arith.cmpi ne, %9, %c0_i32_3 : i32
    scf.if %10 {
      %c0 = arith.constant 0 : index
      %c0_4 = arith.constant 0 : index
      %11 = vector.load %arg3[%c0, %c0_4] : memref<1x32xi32, #tpu.memory_space<vmem>>, vector<1x32xi32>
      %12 = arith.sitofp %11 : vector<1x32xi32> to vector<1x32xf32>
      %cst = arith.constant 1.000000e+00 : f32
      %13 = vector.broadcast %cst : f32 to vector<1x32xf32>
      %14 = arith.maximumf %12, %13 : vector<1x32xf32>
      %cst_5 = arith.constant 1.000000e+00 : f32
      %15 = vector.broadcast %cst_5 : f32 to vector<1x32xf32>
      %16 = arith.divf %15, %14 : vector<1x32xf32>
      %17 = tpu.iota {dimensions = array<i32: 1>} : vector<2x32xi32>
      %18 = tpu.iota {dimensions = array<i32: 0>} : vector<2x32xi32>
      %c16_i32 = arith.constant 16 : i32
      %19 = vector.broadcast %c16_i32 : i32 to vector<2x32xi32>
      %20 = arith.muli %18, %19 : vector<2x32xi32>
      %21 = arith.cmpi sge, %17, %20 : vector<2x32xi32>
      %c16_i32_6 = arith.constant 16 : i32
      %22 = vector.broadcast %c16_i32_6 : i32 to vector<2x32xi32>
      %23 = arith.addi %20, %22 : vector<2x32xi32>
      %24 = arith.cmpi slt, %17, %23 : vector<2x32xi32>
      %25 = arith.andi %21, %24 : vector<2x32xi1>
      %cst_7 = arith.constant 0.000000e+00 : f32
      %26 = vector.shape_cast %16 : vector<1x32xf32> to vector<1x32xf32>
      %27 = vector.broadcast %26 : vector<1x32xf32> to vector<2x32xf32>
      %28 = vector.broadcast %cst_7 : f32 to vector<2x32xf32>
      %29 = arith.select %25, %27, %28 : vector<2x32xi1>, vector<2x32xf32>
      %c0_8 = arith.constant 0 : index
      %c0_9 = arith.constant 0 : index
      %30 = vector.load %arg17[%c0_8, %c0_9] : memref<1x32xf32, #tpu.memory_space<vmem>>, vector<1x32xf32>
      %31 = vector.broadcast %30 : vector<1x32xf32> to vector<2x32xf32>
      %32 = arith.mulf %31, %29 : vector<2x32xf32>
      %c0_10 = arith.constant 0 : index
      %c0_11 = arith.constant 0 : index
      %33 = vector.load %arg6[%c0_10, %c0_11] : memref<32x16xf32, #tpu.memory_space<vmem>>, vector<32x16xf32>
      %cst_12 = arith.constant dense<0.000000e+00> : vector<2x16xf32>
      %34 = tpu.matmul %32, %33, %cst_12 {dimension_numbers = #tpu.dot_dimension_numbers<[1], [0], [0], [1], [0, 0, 1, 1], [], []>} : vector<2x32xf32>, vector<32x16xf32>, vector<2x16xf32> -> vector<2x16xf32>
      %c0_13 = arith.constant 0 : index
      %c0_14 = arith.constant 0 : index
      %35 = vector.load %arg18[%c0_13, %c0_14] : memref<1x32xf32, #tpu.memory_space<vmem>>, vector<1x32xf32>
      %36 = vector.broadcast %35 : vector<1x32xf32> to vector<2x32xf32>
      %37 = arith.mulf %36, %29 : vector<2x32xf32>
      %c0_15 = arith.constant 0 : index
      %c0_16 = arith.constant 0 : index
      %38 = vector.load %arg6[%c0_15, %c0_16] : memref<32x16xf32, #tpu.memory_space<vmem>>, vector<32x16xf32>
      %cst_17 = arith.constant dense<0.000000e+00> : vector<2x16xf32>
      %39 = tpu.matmul %37, %38, %cst_17 {dimension_numbers = #tpu.dot_dimension_numbers<[1], [0], [0], [1], [0, 0, 1, 1], [], []>} : vector<2x32xf32>, vector<32x16xf32>, vector<2x16xf32> -> vector<2x16xf32>
      %c0_18 = arith.constant 0 : index
      %c0_19 = arith.constant 0 : index
      %40 = vector.load %arg7[%c0_18, %c0_19] : memref<16x128xf32, #tpu.memory_space<vmem>>, vector<16x128xf32>
      %cst_20 = arith.constant dense<0.000000e+00> : vector<2x128xf32>
      %41 = tpu.matmul %34, %40, %cst_20 {dimension_numbers = #tpu.dot_dimension_numbers<[1], [0], [0], [1], [0, 0, 1, 1], [], []>} : vector<2x16xf32>, vector<16x128xf32>, vector<2x128xf32> -> vector<2x128xf32>
      %c0_21 = arith.constant 0 : index
      %c0_22 = arith.constant 0 : index
      %42 = vector.load %arg8[%c0_21, %c0_22] : memref<1x128xf32, #tpu.memory_space<vmem>>, vector<1x128xf32>
      %43 = vector.broadcast %42 : vector<1x128xf32> to vector<2x128xf32>
      %44 = arith.addf %41, %43 : vector<2x128xf32>
      %c0_23 = arith.constant 0 : index
      %c0_24 = arith.constant 0 : index
      %45 = vector.load %arg9[%c0_23, %c0_24] : memref<16x128xf32, #tpu.memory_space<vmem>>, vector<16x128xf32>
      %cst_25 = arith.constant dense<0.000000e+00> : vector<2x128xf32>
      %46 = tpu.matmul %39, %45, %cst_25 {dimension_numbers = #tpu.dot_dimension_numbers<[1], [0], [0], [1], [0, 0, 1, 1], [], []>} : vector<2x16xf32>, vector<16x128xf32>, vector<2x128xf32> -> vector<2x128xf32>
      %c0_26 = arith.constant 0 : index
      %c0_27 = arith.constant 0 : index
      %47 = vector.load %arg10[%c0_26, %c0_27] : memref<1x128xf32, #tpu.memory_space<vmem>>, vector<1x128xf32>
      %48 = vector.broadcast %47 : vector<1x128xf32> to vector<2x128xf32>
      %49 = arith.addf %46, %48 : vector<2x128xf32>
      %c0_28 = arith.constant 0 : index
      %c0_29 = arith.constant 0 : index
      %c0_30 = arith.constant 0 : index
      %50 = vector.load %arg15[%c0_28, %c0_29, %c0_30] : memref<2x2x128xf32, #tpu.memory_space<vmem>>, vector<1x2x128xf32>
      %51 = vector.shape_cast %50 : vector<1x2x128xf32> to vector<2x128xf32>
      %52 = vector.shape_cast %44 : vector<2x128xf32> to vector<1x2x128xf32>
      tpu.vector_store %arg15[%c0_28, %c0_29, %c0_30], %52 {strides = array<i32>} : memref<2x2x128xf32, #tpu.memory_space<vmem>>, vector<1x2x128xf32>,
      %c1 = arith.constant 1 : index
      %c0_31 = arith.constant 0 : index
      %c0_32 = arith.constant 0 : index
      %53 = vector.load %arg15[%c1, %c0_31, %c0_32] : memref<2x2x128xf32, #tpu.memory_space<vmem>>, vector<1x2x128xf32>
      %54 = vector.shape_cast %53 : vector<1x2x128xf32> to vector<2x128xf32>
      %55 = vector.shape_cast %49 : vector<2x128xf32> to vector<1x2x128xf32>
      tpu.vector_store %arg15[%c1, %c0_31, %c0_32], %55 {strides = array<i32>} : memref<2x2x128xf32, #tpu.memory_space<vmem>>, vector<1x2x128xf32>,
      %56 = tpu.concatenate %44, %49 in 0 : vector<2x128xf32>, vector<2x128xf32> -> vector<4x128xf32>
      %c0_33 = arith.constant 0 : index
      %c0_34 = arith.constant 0 : index
      %57 = vector.load %arg11[%c0_33, %c0_34] : memref<128x128xf32, #tpu.memory_space<vmem>>, vector<128x128xf32>
      %cst_35 = arith.constant dense<0.000000e+00> : vector<4x128xf32>
      %58 = tpu.matmul %56, %57, %cst_35 {dimension_numbers = #tpu.dot_dimension_numbers<[1], [0], [0], [1], [0, 0, 1, 1], [], []>} : vector<4x128xf32>, vector<128x128xf32>, vector<4x128xf32> -> vector<4x128xf32>
      %c0_36 = arith.constant 0 : index
      %c0_37 = arith.constant 0 : index
      %59 = vector.load %arg12[%c0_36, %c0_37] : memref<1x128xf32, #tpu.memory_space<vmem>>, vector<1x128xf32>
      %60 = vector.broadcast %59 : vector<1x128xf32> to vector<4x128xf32>
      %61 = arith.addf %58, %60 : vector<4x128xf32>
      %cst_38 = arith.constant 0.000000e+00 : f32
      %62 = vector.broadcast %cst_38 : f32 to vector<4x128xf32>
      %63 = arith.maximumf %61, %62 : vector<4x128xf32>
      %c0_39 = arith.constant 0 : index
      %c0_40 = arith.constant 0 : index
      %64 = vector.load %arg13[%c0_39, %c0_40] : memref<1x128xf32, #tpu.memory_space<vmem>>, vector<1x128xf32>
      %65 = vector.broadcast %64 : vector<1x128xf32> to vector<4x128xf32>
      %66 = arith.mulf %63, %65 : vector<4x128xf32>
      %cst_41 = arith.constant dense<0.000000e+00> : vector<4xf32>
      %67 = vector.multi_reduction <add>, %66, %cst_41 [1] : vector<4x128xf32> to vector<4xf32>
      %68 = vector.shape_cast %67 : vector<4xf32> to vector<4x1xf32>
      %c0_42 = arith.constant 0 : index
      %c0_43 = arith.constant 0 : index
      %69 = vector.load %arg14[%c0_42, %c0_43] : memref<1x1xf32, #tpu.memory_space<vmem>>, vector<1x1xf32>
      %70 = vector.broadcast %69 : vector<1x1xf32> to vector<4x1xf32>
      %71 = arith.addf %68, %70 : vector<4x1xf32>
      %72 = arith.negf %71 : vector<4x1xf32>
      %73 = math.exp %72 : vector<4x1xf32>
      %cst_44 = arith.constant 1.000000e+00 : f32
      %74 = vector.broadcast %cst_44 : f32 to vector<4x1xf32>
      %75 = arith.addf %74, %73 : vector<4x1xf32>
      %76 = arith.divf %74, %75 : vector<4x1xf32>
      %77 = vector.extract_strided_slice %76 {offsets = [0, 0], sizes = [2, 1], strides = [1, 1]} : vector<4x1xf32> to vector<2x1xf32>
      %78 = vector.shape_cast %77 : vector<2x1xf32> to vector<2x1xf32>
      %79 = vector.broadcast %78 : vector<2x1xf32> to vector<2x128xf32>
      %c0_45 = arith.constant 0 : index
      %c0_46 = arith.constant 0 : index
      %c0_47 = arith.constant 0 : index
      %80 = vector.load %arg16[%c0_45, %c0_46, %c0_47] : memref<2x2x128xf32, #tpu.memory_space<vmem>>, vector<1x2x128xf32>
      %81 = vector.shape_cast %80 : vector<1x2x128xf32> to vector<2x128xf32>
      %82 = vector.shape_cast %79 : vector<2x128xf32> to vector<1x2x128xf32>
      tpu.vector_store %arg16[%c0_45, %c0_46, %c0_47], %82 {strides = array<i32>} : memref<2x2x128xf32, #tpu.memory_space<vmem>>, vector<1x2x128xf32>,
      %83 = vector.extract_strided_slice %76 {offsets = [2, 0], sizes = [2, 1], strides = [1, 1]} : vector<4x1xf32> to vector<2x1xf32>
      %84 = vector.shape_cast %83 : vector<2x1xf32> to vector<2x1xf32>
      %85 = vector.broadcast %84 : vector<2x1xf32> to vector<2x128xf32>
      %c1_48 = arith.constant 1 : index
      %c0_49 = arith.constant 0 : index
      %c0_50 = arith.constant 0 : index
      %86 = vector.load %arg16[%c1_48, %c0_49, %c0_50] : memref<2x2x128xf32, #tpu.memory_space<vmem>>, vector<1x2x128xf32>
      %87 = vector.shape_cast %86 : vector<1x2x128xf32> to vector<2x128xf32>
      %88 = vector.shape_cast %85 : vector<2x128xf32> to vector<1x2x128xf32>
      tpu.vector_store %arg16[%c1_48, %c0_49, %c0_50], %88 {strides = array<i32>} : memref<2x2x128xf32, #tpu.memory_space<vmem>>, vector<1x2x128xf32>,
    } else {
    }
    return
  }
  func.func @transform_0(%arg0: i32, %arg1: i32, %arg2: memref<1xi32, #tpu.memory_space<smem>>) -> (i32, i32) {
    %c0_i32 = arith.constant 0 : i32
    %c0_i32_0 = arith.constant 0 : i32
    return %c0_i32, %arg0 : i32, i32
  }
  func.func @transform_1(%arg0: i32, %arg1: i32, %arg2: memref<1xi32, #tpu.memory_space<smem>>) -> (i32, i32) {
    %0 = arith.index_cast %arg0 : i32 to index
    %1 = memref.load %arg2[%0] : memref<1xi32, #tpu.memory_space<smem>>
    %c1_i32 = arith.constant 1 : i32
    %2 = arith.subi %1, %c1_i32 : i32
    %c0_i32 = arith.constant 0 : i32
    %3 = arith.maxsi %2, %c0_i32 : i32
    %4 = arith.minsi %arg1, %3 : i32
    %c0_i32_0 = arith.constant 0 : i32
    return %4, %arg0 : i32, i32
  }
  func.func @transform_2(%arg0: i32, %arg1: i32, %arg2: memref<1xi32, #tpu.memory_space<smem>>) -> (i32, i32) {
    %0 = arith.index_cast %arg0 : i32 to index
    %1 = memref.load %arg2[%0] : memref<1xi32, #tpu.memory_space<smem>>
    %c1_i32 = arith.constant 1 : i32
    %2 = arith.subi %1, %c1_i32 : i32
    %c0_i32 = arith.constant 0 : i32
    %3 = arith.maxsi %2, %c0_i32 : i32
    %4 = arith.minsi %arg1, %3 : i32
    %c0_i32_0 = arith.constant 0 : i32
    return %4, %arg0 : i32, i32
  }
  func.func @transform_3(%arg0: i32, %arg1: i32, %arg2: memref<1xi32, #tpu.memory_space<smem>>) -> (i32, i32) {
    %c0_i32 = arith.constant 0 : i32
    %c0_i32_0 = arith.constant 0 : i32
    %c0_i32_1 = arith.constant 0 : i32
    return %c0_i32, %c0_i32_0 : i32, i32
  }
  func.func @transform_4(%arg0: i32, %arg1: i32, %arg2: memref<1xi32, #tpu.memory_space<smem>>) -> (i32, i32) {
    %c0_i32 = arith.constant 0 : i32
    %c0_i32_0 = arith.constant 0 : i32
    %c0_i32_1 = arith.constant 0 : i32
    return %c0_i32, %c0_i32_0 : i32, i32
  }
  func.func @transform_5(%arg0: i32, %arg1: i32, %arg2: memref<1xi32, #tpu.memory_space<smem>>) -> (i32, i32) {
    %c0_i32 = arith.constant 0 : i32
    %c0_i32_0 = arith.constant 0 : i32
    %c0_i32_1 = arith.constant 0 : i32
    return %c0_i32, %c0_i32_0 : i32, i32
  }
  func.func @transform_6(%arg0: i32, %arg1: i32, %arg2: memref<1xi32, #tpu.memory_space<smem>>) -> (i32, i32) {
    %c0_i32 = arith.constant 0 : i32
    %c0_i32_0 = arith.constant 0 : i32
    %c0_i32_1 = arith.constant 0 : i32
    return %c0_i32, %c0_i32_0 : i32, i32
  }
  func.func @transform_7(%arg0: i32, %arg1: i32, %arg2: memref<1xi32, #tpu.memory_space<smem>>) -> (i32, i32) {
    %c0_i32 = arith.constant 0 : i32
    %c0_i32_0 = arith.constant 0 : i32
    %c0_i32_1 = arith.constant 0 : i32
    return %c0_i32, %c0_i32_0 : i32, i32
  }
  func.func @transform_8(%arg0: i32, %arg1: i32, %arg2: memref<1xi32, #tpu.memory_space<smem>>) -> (i32, i32) {
    %c0_i32 = arith.constant 0 : i32
    %c0_i32_0 = arith.constant 0 : i32
    %c0_i32_1 = arith.constant 0 : i32
    return %c0_i32, %c0_i32_0 : i32, i32
  }
  func.func @transform_9(%arg0: i32, %arg1: i32, %arg2: memref<1xi32, #tpu.memory_space<smem>>) -> (i32, i32) {
    %c0_i32 = arith.constant 0 : i32
    %c0_i32_0 = arith.constant 0 : i32
    %c0_i32_1 = arith.constant 0 : i32
    return %c0_i32, %c0_i32_0 : i32, i32
  }
  func.func @transform_10(%arg0: i32, %arg1: i32, %arg2: memref<1xi32, #tpu.memory_space<smem>>) -> (i32, i32) {
    %c0_i32 = arith.constant 0 : i32
    %c0_i32_0 = arith.constant 0 : i32
    %c0_i32_1 = arith.constant 0 : i32
    return %c0_i32, %c0_i32_0 : i32, i32
  }
  func.func @transform_11(%arg0: i32, %arg1: i32, %arg2: memref<1xi32, #tpu.memory_space<smem>>) -> (i32, i32) {
    %c0_i32 = arith.constant 0 : i32
    %c0_i32_0 = arith.constant 0 : i32
    %c0_i32_1 = arith.constant 0 : i32
    return %c0_i32, %c0_i32_0 : i32, i32
  }
  func.func @transform_12(%arg0: i32, %arg1: i32, %arg2: memref<1xi32, #tpu.memory_space<smem>>) -> (i32, i32, i32) {
    %c0_i32 = arith.constant 0 : i32
    %c0_i32_0 = arith.constant 0 : i32
    %c0_i32_1 = arith.constant 0 : i32
    return %c0_i32, %arg0, %c0_i32_0 : i32, i32, i32
  }
  func.func @transform_13(%arg0: i32, %arg1: i32, %arg2: memref<1xi32, #tpu.memory_space<smem>>) -> (i32, i32, i32) {
    %c0_i32 = arith.constant 0 : i32
    %c0_i32_0 = arith.constant 0 : i32
    %c0_i32_1 = arith.constant 0 : i32
    return %c0_i32, %arg0, %c0_i32_0 : i32, i32, i32
  }
}

</mosaic_0001>

<llo_original>
// kernel: tpu_custom_call.1
$region0: #{tpu_custom_call.1}
  #allocation0 [shape = 'u32[]', space=smem, size = 0x4, offset = 0x4, fixed_abs, tag = 'smem constant byte address 0x4 - core index']
  #allocation1 [shape = 'u32[144,128]{1,0:T(1,128)}', space=vmem, size = 0x12000, scoped, tag = 'internal scratch']
  #allocation2 [shape = 'f32[1,32]{1,0:T(1,128)}', space=vmem, size = 0x200, scoped, tag = 'scratch operand']
  #allocation3 [shape = 'f32[1,32]{1,0:T(1,128)}', space=vmem, size = 0x200, scoped, tag = 'scratch operand']
  #allocation4 [shape = 's32[1]{0}', space=sflag, size = 0x4, scoped, tag = 'scoped memory for tpu_custom_call.1']
  #allocation5 [shape = 's32[1]{0:T(128)S(6)}', space=smem, size = 0x200, scoped, tag = 'prefetched SMEM operand 0']
  #allocation6 [shape = 'f32[1,1]{1,0:T(1,128)S(1)}', space=vmem, size = 0x200, scoped, tag = 'scoped memory for tpu_custom_call.1']
  %s0 = inlined_call_operand.<no memory space> [shape: s32[1], index: 0, kind: input, shape index: {}]
  %s1 = inlined_call_operand.hbm [shape: s32[1,32], index: 1, kind: input, shape index: {}]
  %s2 = inlined_call_operand.hbm [shape: f32[8,32], index: 2, kind: input, shape index: {}]
  %s3 = inlined_call_operand.hbm [shape: f32[8,32], index: 3, kind: input, shape index: {}]
  %s4 = inlined_call_operand.hbm [shape: f32[32,16], index: 4, kind: input, shape index: {}]
  %s5 = inlined_call_operand.hbm [shape: f32[16,128], index: 5, kind: input, shape index: {}]
  %s6 = inlined_call_operand.hbm [shape: f32[1,128], index: 6, kind: input, shape index: {}]
  %s7 = inlined_call_operand.hbm [shape: f32[16,128], index: 7, kind: input, shape index: {}]
  %s8 = inlined_call_operand.hbm [shape: f32[1,128], index: 8, kind: input, shape index: {}]
  %s9 = inlined_call_operand.hbm [shape: f32[128,128], index: 9, kind: input, shape index: {}]
  %s10 = inlined_call_operand.hbm [shape: f32[1,128], index: 10, kind: input, shape index: {}]
  %s11 = inlined_call_operand.hbm [shape: f32[1,128], index: 11, kind: input, shape index: {}]
  %s12 = inlined_call_operand.<no memory space> [shape: f32[1,1], index: 12, kind: input, shape index: {}]
  %s13 = inlined_call_operand.hbm [shape: f32[2,2,128], index: 13, kind: output, shape index: {0}]
  %s14 = inlined_call_operand.hbm [shape: f32[2,2,128], index: 14, kind: output, shape index: {1}]
  %15 = xla_tuple %s13, %s14
  %s16 = sld [smem:[#allocation0]]
  $region122: #{tpu_custom_call.1} parent=0
    _
  %s18 = ssub.s32 1, %s16
  %s19 = scalar_select 0, %s18, %s16
  %20 = sst [smem:[#allocation5]] %s0
  %v21 = vstv %s12
  %22 = vst [vmem:[#allocation6] sm:$0x1] %v21
  $region1: #{tpu_custom_call.1} parent=0
    #allocation7 [shape = 'u8[512]{0}', space=vmem, size = 0x400, scoped, tag = 'input window, operand 1, single buffered']
    #allocation8 [shape = 's32[1]{0}', space=sflag, size = 0x4, scoped, tag = 'scoped memory for tpu_custom_call.1']
    #allocation9 [shape = 's32[1]{0}', space=sflag, size = 0x4, scoped, tag = 'scoped memory for tpu_custom_call.1']
    #allocation10 [shape = 'u8[4096]{0}', space=vmem, size = 0x1000, scoped, tag = 'input window, operand 2, single buffered']
    #allocation11 [shape = 's32[1]{0}', space=sflag, size = 0x4, scoped, tag = 'scoped memory for tpu_custom_call.1']
    #allocation12 [shape = 'u8[4096]{0}', space=vmem, size = 0x1000, scoped, tag = 'input window, operand 3, single buffered']
    #allocation13 [shape = 'u8[16384]{0}', space=vmem, size = 0x4000, scoped, tag = 'input window, operand 4, single buffered']
    #allocation14 [shape = 's32[1]{0}', space=sflag, size = 0x4, scoped, tag = 'scoped memory for tpu_custom_call.1']
    #allocation15 [shape = 'u8[8192]{0}', space=vmem, size = 0x2000, scoped, tag = 'input window, operand 5, single buffered']
    #allocation16 [shape = 'u8[512]{0}', space=vmem, size = 0x400, scoped, tag = 'input window, operand 6, single buffered']
    #allocation17 [shape = 's32[1]{0}', space=sflag, size = 0x4, scoped, tag = 'scoped memory for tpu_custom_call.1']
    #allocation18 [shape = 'u8[8192]{0}', space=vmem, size = 0x2000, scoped, tag = 'input window, operand 7, single buffered']
    #allocation19 [shape = 'u8[512]{0}', space=vmem, size = 0x400, scoped, tag = 'input window, operand 8, single buffered']
    #allocation20 [shape = 's32[1]{0}', space=sflag, size = 0x4, scoped, tag = 'scoped memory for tpu_custom_call.1']
    #allocation21 [shape = 'u8[65536]{0}', space=vmem, size = 0x10000, scoped, tag = 'input window, operand 9, single buffered']
    #allocation22 [shape = 'u8[512]{0}', space=vmem, size = 0x400, scoped, tag = 'input window, operand 10, single buffered']
    #allocation23 [shape = 's32[1]{0}', space=sflag, size = 0x4, scoped, tag = 'scoped memory for tpu_custom_call.1']
    #allocation24 [shape = 'u8[512]{0}', space=vmem, size = 0x400, scoped, tag = 'input window, operand 11, single buffered']
    #allocation25 [shape = 'u8[2048]{0}', space=vmem, size = 0x800, scoped, tag = 'output window, operand 0, single buffered']
    #allocation26 [shape = 'u8[2048]{0}', space=vmem, size = 0x800, scoped, tag = 'output window, operand 1, single buffered']
    #allocation27 [shape = 's32[1]{0}', space=sflag, size = 0x4, scoped, tag = 'scoped memory for tpu_custom_call.1']
    %23 = vsyncpa [#allocation8], 0
    %24 = vsyncpa [#allocation11], 0
    %25 = vsyncpa [#allocation14], 0
    %26 = vsyncpa [#allocation17], 0
    %27 = vsyncpa [#allocation20], 0
    %28 = vsyncpa [#allocation23], 0
    %29 = vsyncpa [#allocation9], 0
    %30 = vsyncpa [#allocation27], 0
    // Predicated region
    $region2: #{tpu_custom_call.1} parent=1 // pred_check
      _
    $region3: #{tpu_custom_call.1} parent=1 // pred_check_branch
      %32 = sbr.rel (0) target = $region5
    $region4: #{tpu_custom_call.1} parent=1 // pred_region
      %s34 = ssub.s32 16, 16
      %35 = vsyncadd [#allocation8], %s34
      %s37 = sshll.u32 [#allocation7], 4
      %s38 = int_to_ptr.vmem [resolvable:$true] %s37
      %40 = dma.hbm_to_vmem [thread:$0]  %s1, 16, %s38, [#allocation8]
    $region5: #{tpu_custom_call.1} parent=1 // pred_fallthru
      _
    // Predicated region
    $region6: #{tpu_custom_call.1} parent=1 // pred_check
      _
    $region7: #{tpu_custom_call.1} parent=1 // pred_check_branch
      %42 = sbr.rel (0) target = $region9
    $region8: #{tpu_custom_call.1} parent=1 // pred_region
      %s43 = sld [smem:[#allocation5]]
      %s44 = ssub.s32 %s43, 1
      %p45 = scmp.gt.s32.totalorder %s44, 0
      %s46 = scalar_select %p45, %s44, 0
      %p47 = scmp.lt.s32.totalorder 0, %s46
      %s48 = scalar_select %p47, 0, %s46
      %s50 = ssub.s32 128, 128
      %51 = vsyncadd [#allocation11], %s50
      %s52 = smul.addr %s48, 128
      %s53 = scalar_lea.hbm %s2, %s52
      %s55 = sshll.u32 [#allocation10], 4
      %s56 = int_to_ptr.vmem [resolvable:$true] %s55
      %58 = dma.hbm_to_vmem [thread:$0]  %s53, 128, %s56, [#allocation11]
    $region9: #{tpu_custom_call.1} parent=1 // pred_fallthru
      _
    // Predicated region
    $region10: #{tpu_custom_call.1} parent=1 // pred_check
      _
    $region11: #{tpu_custom_call.1} parent=1 // pred_check_branch
      %60 = sbr.rel (0) target = $region13
    $region12: #{tpu_custom_call.1} parent=1 // pred_region
      %s61 = sld [smem:[#allocation5]]
      %s62 = ssub.s32 %s61, 1
      %p63 = scmp.gt.s32.totalorder %s62, 0
      %s64 = scalar_select %p63, %s62, 0
      %p65 = scmp.lt.s32.totalorder 0, %s64
      %s66 = scalar_select %p65, 0, %s64
      %s68 = ssub.s32 128, 128
      %69 = vsyncadd [#allocation11], %s68
      %s70 = smul.addr %s66, 128
      %s71 = scalar_lea.hbm %s3, %s70
      %s73 = sshll.u32 [#allocation12], 4
      %s74 = int_to_ptr.vmem [resolvable:$true] %s73
      %76 = dma.hbm_to_vmem [thread:$0]  %s71, 128, %s74, [#allocation11]
    $region13: #{tpu_custom_call.1} parent=1 // pred_fallthru
      _
    // Predicated region
    $region14: #{tpu_custom_call.1} parent=1 // pred_check
      _
    $region15: #{tpu_custom_call.1} parent=1 // pred_check_branch
      %78 = sbr.rel (0) target = $region17
    $region16: #{tpu_custom_call.1} parent=1 // pred_region
      %s80 = ssub.s32 512, 512
      %81 = vsyncadd [#allocation14], %s80
      %s82 = sshll.u32 [#allocation13], 4
      %s83 = int_to_ptr.vmem [resolvable:$true] %s82
      %88 = dma.hbm_to_vmem [thread:$0]  %s4, 512, %s83, [#allocation14], 128, 128, 8
    $region17: #{tpu_custom_call.1} parent=1 // pred_fallthru
      _
    // Predicated region
    $region18: #{tpu_custom_call.1} parent=1 // pred_check
      _
    $region19: #{tpu_custom_call.1} parent=1 // pred_check_branch
      %90 = sbr.rel (0) target = $region21
    $region20: #{tpu_custom_call.1} parent=1 // pred_region
      %s92 = ssub.s32 256, 256
      %93 = vsyncadd [#allocation14], %s92
      %s94 = sshll.u32 [#allocation15], 4
      %s95 = int_to_ptr.vmem [resolvable:$true] %s94
      %100 = dma.hbm_to_vmem [thread:$0]  %s5, 256, %s95, [#allocation14], 128, 128, 8
    $region21: #{tpu_custom_call.1} parent=1 // pred_fallthru
      _
    // Predicated region
    $region22: #{tpu_custom_call.1} parent=1 // pred_check
      _
    $region23: #{tpu_custom_call.1} parent=1 // pred_check_branch
      %102 = sbr.rel (0) target = $region25
    $region24: #{tpu_custom_call.1} parent=1 // pred_region
      %s104 = ssub.s32 16, 16
      %105 = vsyncadd [#allocation17], %s104
      %s107 = sshll.u32 [#allocation16], 4
      %s108 = int_to_ptr.vmem [resolvable:$true] %s107
      %110 = dma.hbm_to_vmem [thread:$0]  %s6, 16, %s108, [#allocation17]
    $region25: #{tpu_custom_call.1} parent=1 // pred_fallthru
      _
    // Predicated region
    $region26: #{tpu_custom_call.1} parent=1 // pred_check
      _
    $region27: #{tpu_custom_call.1} parent=1 // pred_check_branch
      %112 = sbr.rel (0) target = $region29
    $region28: #{tpu_custom_call.1} parent=1 // pred_region
      %s114 = ssub.s32 256, 256
      %115 = vsyncadd [#allocation17], %s114
      %s116 = sshll.u32 [#allocation18], 4
      %s117 = int_to_ptr.vmem [resolvable:$true] %s116
      %122 = dma.hbm_to_vmem [thread:$0]  %s7, 256, %s117, [#allocation17], 128, 128, 8
    $region29: #{tpu_custom_call.1} parent=1 // pred_fallthru
      _
    // Predicated region
    $region30: #{tpu_custom_call.1} parent=1 // pred_check
      _
    $region31: #{tpu_custom_call.1} parent=1 // pred_check_branch
      %124 = sbr.rel (0) target = $region33
    $region32: #{tpu_custom_call.1} parent=1 // pred_region
      %s126 = ssub.s32 16, 16
      %127 = vsyncadd [#allocation20], %s126
      %s129 = sshll.u32 [#allocation19], 4
      %s130 = int_to_ptr.vmem [resolvable:$true] %s129
      %132 = dma.hbm_to_vmem [thread:$0]  %s8, 16, %s130, [#allocation20]
    $region33: #{tpu_custom_call.1} parent=1 // pred_fallthru
      _
    // Predicated region
    $region34: #{tpu_custom_call.1} parent=1 // pred_check
      _
    $region35: #{tpu_custom_call.1} parent=1 // pred_check_branch
      %134 = sbr.rel (0) target = $region37
    $region36: #{tpu_custom_call.1} parent=1 // pred_region
      %s136 = ssub.s32 2048, 2048
      %137 = vsyncadd [#allocation20], %s136
      %s138 = sshll.u32 [#allocation21], 4
      %s139 = int_to_ptr.vmem [resolvable:$true] %s138
      %144 = dma.hbm_to_vmem [thread:$0]  %s9, 2048, %s139, [#allocation20], 128, 128, 8
    $region37: #{tpu_custom_call.1} parent=1 // pred_fallthru
      _
    // Predicated region
    $region38: #{tpu_custom_call.1} parent=1 // pred_check
      _
    $region39: #{tpu_custom_call.1} parent=1 // pred_check_branch
      %146 = sbr.rel (0) target = $region41
    $region40: #{tpu_custom_call.1} parent=1 // pred_region
      %s148 = ssub.s32 16, 16
      %149 = vsyncadd [#allocation23], %s148
      %s151 = sshll.u32 [#allocation22], 4
      %s152 = int_to_ptr.vmem [resolvable:$true] %s151
      %154 = dma.hbm_to_vmem [thread:$0]  %s10, 16, %s152, [#allocation23]
    $region41: #{tpu_custom_call.1} parent=1 // pred_fallthru
      _
    // Predicated region
    $region42: #{tpu_custom_call.1} parent=1 // pred_check
      _
    $region43: #{tpu_custom_call.1} parent=1 // pred_check_branch
      %156 = sbr.rel (0) target = $region45
    $region44: #{tpu_custom_call.1} parent=1 // pred_region
      %s158 = ssub.s32 16, 16
      %159 = vsyncadd [#allocation23], %s158
      %s161 = sshll.u32 [#allocation24], 4
      %s162 = int_to_ptr.vmem [resolvable:$true] %s161
      %164 = dma.hbm_to_vmem [thread:$0]  %s11, 16, %s162, [#allocation23]
    $region45: #{tpu_custom_call.1} parent=1 // pred_fallthru
      _
    // Predicated region
    $region46: #{tpu_custom_call.1} parent=1 // pred_check
      _
    $region47: #{tpu_custom_call.1} parent=1 // pred_check_branch
      %166 = sbr.rel (0) target = $region49
    $region48: #{tpu_custom_call.1} parent=1 // pred_region
      _
    $region49: #{tpu_custom_call.1} parent=1 // pred_fallthru
      _
    // Predicated region
    $region50: #{tpu_custom_call.1} parent=1 // pred_check
      _
    $region51: #{tpu_custom_call.1} parent=1 // pred_check_branch
      %168 = sbr.rel (0) target = $region53
    $region52: #{tpu_custom_call.1} parent=1 // pred_region
      %169 = dma.done [#allocation8], 16
    $region53: #{tpu_custom_call.1} parent=1 // pred_fallthru
      _
    // Predicated region
    $region54: #{tpu_custom_call.1} parent=1 // pred_check
      _
    $region55: #{tpu_custom_call.1} parent=1 // pred_check_branch
      %171 = sbr.rel (0) target = $region57
    $region56: #{tpu_custom_call.1} parent=1 // pred_region
      %172 = dma.done [#allocation11], 128
    $region57: #{tpu_custom_call.1} parent=1 // pred_fallthru
      _
    // Predicated region
    $region58: #{tpu_custom_call.1} parent=1 // pred_check
      _
    $region59: #{tpu_custom_call.1} parent=1 // pred_check_branch
      %174 = sbr.rel (0) target = $region61
    $region60: #{tpu_custom_call.1} parent=1 // pred_region
      %175 = dma.done [#allocation11], 128
    $region61: #{tpu_custom_call.1} parent=1 // pred_fallthru
      _
    // Predicated region
    $region62: #{tpu_custom_call.1} parent=1 // pred_check
      _
    $region63: #{tpu_custom_call.1} parent=1 // pred_check_branch
      %177 = sbr.rel (0) target = $region65
    $region64: #{tpu_custom_call.1} parent=1 // pred_region
      %178 = dma.done [#allocation14], 512
    $region65: #{tpu_custom_call.1} parent=1 // pred_fallthru
      _
    // Predicated region
    $region66: #{tpu_custom_call.1} parent=1 // pred_check
      _
    $region67: #{tpu_custom_call.1} parent=1 // pred_check_branch
      %180 = sbr.rel (0) target = $region69
    $region68: #{tpu_custom_call.1} parent=1 // pred_region
      %181 = dma.done [#allocation14], 256
    $region69: #{tpu_custom_call.1} parent=1 // pred_fallthru
      _
    // Predicated region
    $region70: #{tpu_custom_call.1} parent=1 // pred_check
      _
    $region71: #{tpu_custom_call.1} parent=1 // pred_check_branch
      %183 = sbr.rel (0) target = $region73
    $region72: #{tpu_custom_call.1} parent=1 // pred_region
      %184 = dma.done [#allocation17], 16
    $region73: #{tpu_custom_call.1} parent=1 // pred_fallthru
      _
    // Predicated region
    $region74: #{tpu_custom_call.1} parent=1 // pred_check
      _
    $region75: #{tpu_custom_call.1} parent=1 // pred_check_branch
      %186 = sbr.rel (0) target = $region77
    $region76: #{tpu_custom_call.1} parent=1 // pred_region
      %187 = dma.done [#allocation17], 256
    $region77: #{tpu_custom_call.1} parent=1 // pred_fallthru
      _
    // Predicated region
    $region78: #{tpu_custom_call.1} parent=1 // pred_check
      _
    $region79: #{tpu_custom_call.1} parent=1 // pred_check_branch
      %189 = sbr.rel (0) target = $region81
    $region80: #{tpu_custom_call.1} parent=1 // pred_region
      %190 = dma.done [#allocation20], 16
    $region81: #{tpu_custom_call.1} parent=1 // pred_fallthru
      _
    // Predicated region
    $region82: #{tpu_custom_call.1} parent=1 // pred_check
      _
    $region83: #{tpu_custom_call.1} parent=1 // pred_check_branch
      %192 = sbr.rel (0) target = $region85
    $region84: #{tpu_custom_call.1} parent=1 // pred_region
      %193 = dma.done [#allocation20], 2048
    $region85: #{tpu_custom_call.1} parent=1 // pred_fallthru
      _
    // Predicated region
    $region86: #{tpu_custom_call.1} parent=1 // pred_check
      _
    $region87: #{tpu_custom_call.1} parent=1 // pred_check_branch
      %195 = sbr.rel (0) target = $region89
    $region88: #{tpu_custom_call.1} parent=1 // pred_region
      %196 = dma.done [#allocation23], 16
    $region89: #{tpu_custom_call.1} parent=1 // pred_fallthru
      _
    // Predicated region
    $region90: #{tpu_custom_call.1} parent=1 // pred_check
      _
    $region91: #{tpu_custom_call.1} parent=1 // pred_check_branch
      %198 = sbr.rel (0) target = $region93
    $region92: #{tpu_custom_call.1} parent=1 // pred_region
      %199 = dma.done [#allocation23], 16
    $region93: #{tpu_custom_call.1} parent=1 // pred_fallthru
      _
    %s200 = sld [smem:[#allocation5]]
    %s201 = ssub.s32 %s200, 1
    %p202 = scmp.gt.s32.totalorder %s201, 0
    %s203 = scalar_select %p202, %s201, 0
    %p204 = scmp.lt.s32.totalorder 0, %s203
    %s205 = scalar_select %p204, 0, %s203
    %s206 = sld [smem:[#allocation5]]
    %s207 = ssub.s32 %s206, 1
    %p208 = scmp.gt.s32.totalorder %s207, 0
    %s209 = scalar_select %p208, %s207, 0
    %p210 = scmp.lt.s32.totalorder 0, %s209
    %s211 = scalar_select %p210, 0, %s209
    %p212 = scmp.eq.s32.totalorder 0, 0
    // Predicated region
    $region94: #{tpu_custom_call.1} parent=1 // pred_check
      %p213 = pneg %p212
    $region95: #{tpu_custom_call.1} parent=1 // pred_check_branch
      %215 = sbr.rel (%p213) target = $region97
    $region96: #{tpu_custom_call.1} parent=1 // pred_region
      %vm216 = vcmask 253952
      %217 = vst.msk [vmem:[#allocation2] sm:$0x1] %vm216, 0.0
      %218 = vst.msk [vmem:[#allocation3] sm:$0x1] %vm216, 0.0
    $region97: #{tpu_custom_call.1} parent=1 // pred_fallthru
      _
    %s219 = sld [smem:[#allocation5]]
    %p220 = scmp.lt.s32.totalorder 0, %s219
    // Predicated region
    $region98: #{tpu_custom_call.1} parent=1 // pred_check
      %p221 = pneg %p220
    $region99: #{tpu_custom_call.1} parent=1 // pred_check_branch
      %223 = sbr.rel (%p221) target = $region101
    $region100: #{tpu_custom_call.1} parent=1 // pred_region
      %s224 = smul.u32 0, 8
      %v225 = vlaneseq
      %v226 = vshrl.u32 %v225, 7
      %v227 = vstv %s224
      %v228 = vadd.s32 %v227, %v226
      %v229 = vld [vmem:[#allocation7] sm:$0x1]
      %v230 = vlaneseq
      %v231 = vshrl.u32 %v230, 7
      %v232 = vsub.s32 0, %v231
      %v233 = vrot.slane %v229, %v232
      %vm234 = vcmp.lt.s32.totalorder %v228, %v233
      %v235 = vld [vmem:[#allocation10] sm:$0xff]
      %v236 = vsel %vm234, %v235, 0.0
      %v237 = vld [vmem:[#allocation12] sm:$0xff]
      %v238 = vsel %vm234, %v237, 0.0
      %v239 = vld [vmem:[#allocation2] sm:$0x1]
      %vm240 = vcmask 261120
      %v241 = vsel %vm240, %v236, 0.0
      %v242 = vrot.slane %v241, 4
      %v243 = vadd.f32 %v241, %v242
      %v244 = vrot.slane %v243, 2
      %v245 = vadd.f32 %v243, %v244
      %v246 = vrot.slane %v245, 1
      %v247 = vadd.f32 %v245, %v246
      %v248 = vadd.f32 %v239, %v247
      %vm249 = vcmask 253952
      %250 = vst.msk [vmem:[#allocation2] sm:$0x1] %vm249, %v248
      %v251 = vld [vmem:[#allocation3] sm:$0x1]
      %v252 = vsel %vm240, %v238, 0.0
      %v253 = vrot.slane %v252, 4
      %v254 = vadd.f32 %v252, %v253
      %v255 = vrot.slane %v254, 2
      %v256 = vadd.f32 %v254, %v255
      %v257 = vrot.slane %v256, 1
      %v258 = vadd.f32 %v256, %v257
      %v259 = vadd.f32 %v251, %v258
      %260 = vst.msk [vmem:[#allocation3] sm:$0x1] %vm249, %v259
    $region101: #{tpu_custom_call.1} parent=1 // pred_fallthru
      _
    // Predicated region
    $region102: #{tpu_custom_call.1} parent=1 // pred_check
      %p261 = pneg %p212
    $region103: #{tpu_custom_call.1} parent=1 // pred_check_branch
      %263 = sbr.rel (%p261) target = $region105
    $region104: #{tpu_custom_call.1} parent=1 // pred_region
      %v264 = vld [vmem:[#allocation7] sm:$0x1]
      %v265 = vcvt.s32.f32 %v264
      %v266 = vmax.f32 %v265, 1.0
      %v267 = vrcp.pop %v266
      %v268 = vmul.f32 1.0, %v267
      %v269 = vlaneseq
      %v270 = vand.u32 %v269, 127
      %v271 = vlaneseq
      %v272 = vshrl.u32 %v271, 7
      %v273 = vmul.u32 %v272, 16
      %vm274 = vcmp.ge.s32.totalorder %v270, %v273
      %v275 = vadd.s32 %v273, 16
      %vm276 = vcmp.lt.s32.totalorder %v270, %v275
      %vm277 = vmand %vm274, %vm276
      %v279 = vlaneseq
      %v280 = vshrl.u32 %v279, 7
      %v281 = vsub.s32 0, %v280
      %v282 = vrot.slane %v268, %v281
      %v284 = vsel %vm277, %v282, 0.0
      %v285 = vld [vmem:[#allocation2] sm:$0x1]
      %v287 = vlaneseq
      %v288 = vshrl.u32 %v287, 7
      %v289 = vsub.s32 0, %v288
      %v290 = vrot.slane %v285, %v289
      %v292 = vmul.f32 %v290, %v284
      %v293 = vld [vmem:[#allocation13] sm:$0xff]
      %v294 = vld [vmem:[#allocation13 + $0x8] sm:$0xff]
      %v295 = vld [vmem:[#allocation13 + $0x10] sm:$0xff]
      %v296 = vld [vmem:[#allocation13 + $0x18] sm:$0xff]
      %vm297 = vcmask 261120
      %v299 = vsel %vm297, %v292, 0
      %301 = vmatprep.subr.mxu0 0.0
      %302 = vmatpush1.msra.mxu0 %v293
      %303 = vmatprep.subr.mxu0 0.0
      %304 = vmatpush1.msra.mxu0 %v294
      %305 = vmatprep.subr.mxu0 0.0
      %306 = vmatpush1.msra.mxu0 %v295
      %307 = vmatprep.subr.mxu0 0.0
      %308 = vmatpush1.msra.mxu0 %v296
      %309 = vmatprep.subr.mxu0 0.0
      %310 = vmatpush1.msra.mxu0 0.0
      %311 = vmatprep.subr.mxu0 0.0
      %312 = vmatpush1.msra.mxu0 0.0
      %313 = vmatprep.subr.mxu0 0.0
      %314 = vmatpush1.msra.mxu0 0.0
      %315 = vmatprep.subr.mxu0 0.0
      %316 = vmatpush1.msra.mxu0 0.0
      %317 = vmatprep.subr.mxu0 0.0
      %318 = vmatpush1.msra.mxu0 0.0
      %319 = vmatprep.subr.mxu0 0.0
      %320 = vmatpush1.msra.mxu0 0.0
      %321 = vmatprep.subr.mxu0 0.0
      %322 = vmatpush1.msra.mxu0 0.0
      %323 = vmatprep.subr.mxu0 0.0
      %324 = vmatpush1.msra.mxu0 0.0
      %325 = vmatprep.subr.mxu0 0.0
      %326 = vmatpush1.msra.mxu0 0.0
      %327 = vmatprep.subr.mxu0 0.0
      %328 = vmatpush1.msra.mxu0 0.0
      %329 = vmatprep.subr.mxu0 0.0
      %330 = vmatpush1.msra.mxu0 0.0
      %331 = vmatprep.subr.mxu0 0.0
      %332 = vmatpush1.msra.mxu0 0.0
      %333 = vmatprep.subr.mxu0 0.0
      %334 = vmatpush1.msra.mxu0 0.0
      %335 = vmatprep.subr.mxu0 0.0
      %336 = vmatpush1.msra.mxu0 0.0
      %337 = vmatprep.subr.mxu0 0.0
      %338 = vmatpush1.msra.mxu0 0.0
      %339 = vmatprep.subr.mxu0 0.0
      %340 = vmatpush1.msra.mxu0 0.0
      %341 = vmatprep.subr.mxu0 0.0
      %342 = vmatpush1.msra.mxu0 0.0
      %343 = vmatprep.subr.mxu0 0.0
      %344 = vmatpush1.msra.mxu0 0.0
      %345 = vmatprep.subr.mxu0 0.0
      %346 = vmatpush1.msra.mxu0 0.0
      %347 = vmatprep.subr.mxu0 0.0
      %348 = vmatpush1.msra.mxu0 0.0
      %349 = vmatprep.subr.mxu0 0.0
      %350 = vmatpush1.msra.mxu0 0.0
      %351 = vmatprep.subr.mxu0 0.0
      %352 = vmatpush1.msra.mxu0 0.0
      %353 = vmatprep.subr.mxu0 0.0
      %354 = vmatpush1.msra.mxu0 0.0
      %355 = vmatprep.subr.mxu0 0.0
      %356 = vmatpush1.msra.mxu0 0.0
      %357 = vmatprep.subr.mxu0 0.0
      %358 = vmatpush1.msra.mxu0 0.0
      %359 = vmatprep.subr.mxu0 0.0
      %360 = vmatpush1.msra.mxu0 0.0
      %361 = vmatprep.subr.mxu0 0.0
      %362 = vmatpush1.msra.mxu0 0.0
      %363 = vmatprep.subr.mxu0 0.0
      %364 = vmatpush1.msra.mxu0 0.0
      %365 = vmatprep.mubr.f32.mxu0 0.0
      %366 = vmatmul.mubr.f32.gmra.mrb[0].mxu0 %v299
      %v367 = vpop.f32.mrb[0].mxu0
      %v368 = vadd.f32 0.0, %v367
      %v369 = vpop.f32.mrb[0].mxu0
      %370 = vdwg.mxu0
      %v371 = vld [vmem:[#allocation3] sm:$0x1]
      %v373 = vlaneseq
      %v374 = vshrl.u32 %v373, 7
      %v375 = vsub.s32 0, %v374
      %v376 = vrot.slane %v371, %v375
      %v378 = vmul.f32 %v376, %v284
      %v380 = vsel %vm297, %v378, 0
      %382 = vmatprep.subr.mxu0 0.0
      %383 = vmatpush1.msra.mxu0 %v293
      %384 = vmatprep.subr.mxu0 0.0
      %385 = vmatpush1.msra.mxu0 %v294
      %386 = vmatprep.subr.mxu0 0.0
      %387 = vmatpush1.msra.mxu0 %v295
      %388 = vmatprep.subr.mxu0 0.0
      %389 = vmatpush1.msra.mxu0 %v296
      %390 = vmatprep.subr.mxu0 0.0
      %391 = vmatpush1.msra.mxu0 0.0
      %392 = vmatprep.subr.mxu0 0.0
      %393 = vmatpush1.msra.mxu0 0.0
      %394 = vmatprep.subr.mxu0 0.0
      %395 = vmatpush1.msra.mxu0 0.0
      %396 = vmatprep.subr.mxu0 0.0
      %397 = vmatpush1.msra.mxu0 0.0
      %398 = vmatprep.subr.mxu0 0.0
      %399 = vmatpush1.msra.mxu0 0.0
      %400 = vmatprep.subr.mxu0 0.0
      %401 = vmatpush1.msra.mxu0 0.0
      %402 = vmatprep.subr.mxu0 0.0
      %403 = vmatpush1.msra.mxu0 0.0
      %404 = vmatprep.subr.mxu0 0.0
      %405 = vmatpush1.msra.mxu0 0.0
      %406 = vmatprep.subr.mxu0 0.0
      %407 = vmatpush1.msra.mxu0 0.0
      %408 = vmatprep.subr.mxu0 0.0
      %409 = vmatpush1.msra.mxu0 0.0
      %410 = vmatprep.subr.mxu0 0.0
      %411 = vmatpush1.msra.mxu0 0.0
      %412 = vmatprep.subr.mxu0 0.0
      %413 = vmatpush1.msra.mxu0 0.0
      %414 = vmatprep.subr.mxu0 0.0
      %415 = vmatpush1.msra.mxu0 0.0
      %416 = vmatprep.subr.mxu0 0.0
      %417 = vmatpush1.msra.mxu0 0.0
      %418 = vmatprep.subr.mxu0 0.0
      %419 = vmatpush1.msra.mxu0 0.0
      %420 = vmatprep.subr.mxu0 0.0
      %421 = vmatpush1.msra.mxu0 0.0
      %422 = vmatprep.subr.mxu0 0.0
      %423 = vmatpush1.msra.mxu0 0.0
      %424 = vmatprep.subr.mxu0 0.0
      %425 = vmatpush1.msra.mxu0 0.0
      %426 = vmatprep.subr.mxu0 0.0
      %427 = vmatpush1.msra.mxu0 0.0
      %428 = vmatprep.subr.mxu0 0.0
      %429 = vmatpush1.msra.mxu0 0.0
      %430 = vmatprep.subr.mxu0 0.0
      %431 = vmatpush1.msra.mxu0 0.0
      %432 = vmatprep.subr.mxu0 0.0
      %433 = vmatpush1.msra.mxu0 0.0
      %434 = vmatprep.subr.mxu0 0.0
      %435 = vmatpush1.msra.mxu0 0.0
      %436 = vmatprep.subr.mxu0 0.0
      %437 = vmatpush1.msra.mxu0 0.0
      %438 = vmatprep.subr.mxu0 0.0
      %439 = vmatpush1.msra.mxu0 0.0
      %440 = vmatprep.subr.mxu0 0.0
      %441 = vmatpush1.msra.mxu0 0.0
      %442 = vmatprep.subr.mxu0 0.0
      %443 = vmatpush1.msra.mxu0 0.0
      %444 = vmatprep.subr.mxu0 0.0
      %445 = vmatpush1.msra.mxu0 0.0
      %446 = vmatprep.mubr.f32.mxu0 0.0
      %447 = vmatmul.mubr.f32.gmra.mrb[0].mxu0 %v380
      %v448 = vpop.f32.mrb[0].mxu0
      %v449 = vadd.f32 0.0, %v448
      %v450 = vpop.f32.mrb[0].mxu0
      %451 = vdwg.mxu0
      %v452 = vld [vmem:[#allocation15] sm:$0xff]
      %v453 = vld [vmem:[#allocation15 + $0x8] sm:$0xff]
      %v454 = vld [vmem:[#allocation16] sm:$0x1]
      %v456 = vlaneseq
      %v457 = vshrl.u32 %v456, 7
      %v458 = vsub.s32 0, %v457
      %v459 = vrot.slane %v454, %v458
      %vm461 = vcmask 130048
      %v463 = vsel %vm461, %v368, 0
      %465 = vmatprep.subr.mxu0 0.0
      %466 = vmatpush1.msra.mxu0 %v452
      %467 = vmatprep.subr.mxu0 0.0
      %468 = vmatpush1.msra.mxu0 %v453
      %469 = vmatprep.subr.mxu0 0.0
      %470 = vmatpush1.msra.mxu0 0.0
      %471 = vmatprep.subr.mxu0 0.0
      %472 = vmatpush1.msra.mxu0 0.0
      %473 = vmatprep.subr.mxu0 0.0
      %474 = vmatpush1.msra.mxu0 0.0
      %475 = vmatprep.subr.mxu0 0.0
      %476 = vmatpush1.msra.mxu0 0.0
      %477 = vmatprep.subr.mxu0 0.0
      %478 = vmatpush1.msra.mxu0 0.0
      %479 = vmatprep.subr.mxu0 0.0
      %480 = vmatpush1.msra.mxu0 0.0
      %481 = vmatprep.subr.mxu0 0.0
      %482 = vmatpush1.msra.mxu0 0.0
      %483 = vmatprep.subr.mxu0 0.0
      %484 = vmatpush1.msra.mxu0 0.0
      %485 = vmatprep.subr.mxu0 0.0
      %486 = vmatpush1.msra.mxu0 0.0
      %487 = vmatprep.subr.mxu0 0.0
      %488 = vmatpush1.msra.mxu0 0.0
      %489 = vmatprep.subr.mxu0 0.0
      %490 = vmatpush1.msra.mxu0 0.0
      %491 = vmatprep.subr.mxu0 0.0
      %492 = vmatpush1.msra.mxu0 0.0
      %493 = vmatprep.subr.mxu0 0.0
      %494 = vmatpush1.msra.mxu0 0.0
      %495 = vmatprep.subr.mxu0 0.0
      %496 = vmatpush1.msra.mxu0 0.0
      %497 = vmatprep.subr.mxu0 0.0
      %498 = vmatpush1.msra.mxu0 0.0
      %499 = vmatprep.subr.mxu0 0.0
      %500 = vmatpush1.msra.mxu0 0.0
      %501 = vmatprep.subr.mxu0 0.0
      %502 = vmatpush1.msra.mxu0 0.0
      %503 = vmatprep.subr.mxu0 0.0
      %504 = vmatpush1.msra.mxu0 0.0
      %505 = vmatprep.subr.mxu0 0.0
      %506 = vmatpush1.msra.mxu0 0.0
      %507 = vmatprep.subr.mxu0 0.0
      %508 = vmatpush1.msra.mxu0 0.0
      %509 = vmatprep.subr.mxu0 0.0
      %510 = vmatpush1.msra.mxu0 0.0
      %511 = vmatprep.subr.mxu0 0.0
      %512 = vmatpush1.msra.mxu0 0.0
      %513 = vmatprep.subr.mxu0 0.0
      %514 = vmatpush1.msra.mxu0 0.0
      %515 = vmatprep.subr.mxu0 0.0
      %516 = vmatpush1.msra.mxu0 0.0
      %517 = vmatprep.subr.mxu0 0.0
      %518 = vmatpush1.msra.mxu0 0.0
      %519 = vmatprep.subr.mxu0 0.0
      %520 = vmatpush1.msra.mxu0 0.0
      %521 = vmatprep.subr.mxu0 0.0
      %522 = vmatpush1.msra.mxu0 0.0
      %523 = vmatprep.subr.mxu0 0.0
      %524 = vmatpush1.msra.mxu0 0.0
      %525 = vmatprep.subr.mxu0 0.0
      %526 = vmatpush1.msra.mxu0 0.0
      %527 = vmatprep.subr.mxu0 0.0
      %528 = vmatpush1.msra.mxu0 0.0
      %529 = vmatprep.mubr.f32.mxu0 0.0
      %530 = vmatmul.mubr.f32.gmra.mrb[0].mxu0 %v463
      %v531 = vpop.f32.mrb[0].mxu0
      %v532 = vadd.f32 %v459, %v531
      %v533 = vpop.f32.mrb[0].mxu0
      %534 = vdwg.mxu0
      %v535 = vld [vmem:[#allocation18] sm:$0xff]
      %v536 = vld [vmem:[#allocation18 + $0x8] sm:$0xff]
      %v537 = vld [vmem:[#allocation19] sm:$0x1]
      %v539 = vlaneseq
      %v540 = vshrl.u32 %v539, 7
      %v541 = vsub.s32 0, %v540
      %v542 = vrot.slane %v537, %v541
      %v545 = vsel %vm461, %v449, 0
      %547 = vmatprep.subr.mxu0 0.0
      %548 = vmatpush1.msra.mxu0 %v535
      %549 = vmatprep.subr.mxu0 0.0
      %550 = vmatpush1.msra.mxu0 %v536
      %551 = vmatprep.subr.mxu0 0.0
      %552 = vmatpush1.msra.mxu0 0.0
      %553 = vmatprep.subr.mxu0 0.0
      %554 = vmatpush1.msra.mxu0 0.0
      %555 = vmatprep.subr.mxu0 0.0
      %556 = vmatpush1.msra.mxu0 0.0
      %557 = vmatprep.subr.mxu0 0.0
      %558 = vmatpush1.msra.mxu0 0.0
      %559 = vmatprep.subr.mxu0 0.0
      %560 = vmatpush1.msra.mxu0 0.0
      %561 = vmatprep.subr.mxu0 0.0
      %562 = vmatpush1.msra.mxu0 0.0
      %563 = vmatprep.subr.mxu0 0.0
      %564 = vmatpush1.msra.mxu0 0.0
      %565 = vmatprep.subr.mxu0 0.0
      %566 = vmatpush1.msra.mxu0 0.0
      %567 = vmatprep.subr.mxu0 0.0
      %568 = vmatpush1.msra.mxu0 0.0
      %569 = vmatprep.subr.mxu0 0.0
      %570 = vmatpush1.msra.mxu0 0.0
      %571 = vmatprep.subr.mxu0 0.0
      %572 = vmatpush1.msra.mxu0 0.0
      %573 = vmatprep.subr.mxu0 0.0
      %574 = vmatpush1.msra.mxu0 0.0
      %575 = vmatprep.subr.mxu0 0.0
      %576 = vmatpush1.msra.mxu0 0.0
      %577 = vmatprep.subr.mxu0 0.0
      %578 = vmatpush1.msra.mxu0 0.0
      %579 = vmatprep.subr.mxu0 0.0
      %580 = vmatpush1.msra.mxu0 0.0
      %581 = vmatprep.subr.mxu0 0.0
      %582 = vmatpush1.msra.mxu0 0.0
      %583 = vmatprep.subr.mxu0 0.0
      %584 = vmatpush1.msra.mxu0 0.0
      %585 = vmatprep.subr.mxu0 0.0
      %586 = vmatpush1.msra.mxu0 0.0
      %587 = vmatprep.subr.mxu0 0.0
      %588 = vmatpush1.msra.mxu0 0.0
      %589 = vmatprep.subr.mxu0 0.0
      %590 = vmatpush1.msra.mxu0 0.0
      %591 = vmatprep.subr.mxu0 0.0
      %592 = vmatpush1.msra.mxu0 0.0
      %593 = vmatprep.subr.mxu0 0.0
      %594 = vmatpush1.msra.mxu0 0.0
      %595 = vmatprep.subr.mxu0 0.0
      %596 = vmatpush1.msra.mxu0 0.0
      %597 = vmatprep.subr.mxu0 0.0
      %598 = vmatpush1.msra.mxu0 0.0
      %599 = vmatprep.subr.mxu0 0.0
      %600 = vmatpush1.msra.mxu0 0.0
      %601 = vmatprep.subr.mxu0 0.0
      %602 = vmatpush1.msra.mxu0 0.0
      %603 = vmatprep.subr.mxu0 0.0
      %604 = vmatpush1.msra.mxu0 0.0
      %605 = vmatprep.subr.mxu0 0.0
      %606 = vmatpush1.msra.mxu0 0.0
      %607 = vmatprep.subr.mxu0 0.0
      %608 = vmatpush1.msra.mxu0 0.0
      %609 = vmatprep.subr.mxu0 0.0
      %610 = vmatpush1.msra.mxu0 0.0
      %611 = vmatprep.mubr.f32.mxu0 0.0
      %612 = vmatmul.mubr.f32.gmra.mrb[0].mxu0 %v545
      %v613 = vpop.f32.mrb[0].mxu0
      %v614 = vadd.f32 %v542, %v613
      %v615 = vpop.f32.mrb[0].mxu0
      %616 = vdwg.mxu0
      %617 = vst [vmem:[#allocation25] sm:$0x3] %v532
      %s618 = scalar_lea.vmem [#allocation25], 2
      %619 = vst [vmem:[%s618] sm:$0x3] %v614
      %v621 = vrot.slane %v614, 6
      %vm623 = vcmask 1041408
      %v624 = vsel %vm623, %v532, %v621
      %v625 = vld [vmem:[#allocation21] sm:$0xff]
      %v626 = vld [vmem:[#allocation21 + $0x8] sm:$0xff]
      %v627 = vld [vmem:[#allocation21 + $0x10] sm:$0xff]
      %v628 = vld [vmem:[#allocation21 + $0x18] sm:$0xff]
      %v629 = vld [vmem:[#allocation21 + $0x20] sm:$0xff]
      %v630 = vld [vmem:[#allocation21 + $0x28] sm:$0xff]
      %v631 = vld [vmem:[#allocation21 + $0x30] sm:$0xff]
      %v632 = vld [vmem:[#allocation21 + $0x38] sm:$0xff]
      %v633 = vld [vmem:[#allocation21 + $0x40] sm:$0xff]
      %v634 = vld [vmem:[#allocation21 + $0x48] sm:$0xff]
      %v635 = vld [vmem:[#allocation21 + $0x50] sm:$0xff]
      %v636 = vld [vmem:[#allocation21 + $0x58] sm:$0xff]
      %v637 = vld [vmem:[#allocation21 + $0x60] sm:$0xff]
      %v638 = vld [vmem:[#allocation21 + $0x68] sm:$0xff]
      %v639 = vld [vmem:[#allocation21 + $0x70] sm:$0xff]
      %v640 = vld [vmem:[#allocation21 + $0x78] sm:$0xff]
      %v641 = vld [vmem:[#allocation22] sm:$0x1]
      %v643 = vlaneseq
      %v644 = vshrl.u32 %v643, 7
      %v645 = vsub.s32 0, %v644
      %v646 = vrot.slane %v641, %v645
      %648 = vmatprep.subr.mxu0 0.0
      %649 = vmatpush1.msra.mxu0 %v625
      %650 = vmatprep.subr.mxu0 0.0
      %651 = vmatpush1.msra.mxu0 %v626
      %652 = vmatprep.subr.mxu0 0.0
      %653 = vmatpush1.msra.mxu0 %v627
      %654 = vmatprep.subr.mxu0 0.0
      %655 = vmatpush1.msra.mxu0 %v628
      %656 = vmatprep.subr.mxu0 0.0
      %657 = vmatpush1.msra.mxu0 %v629
      %658 = vmatprep.subr.mxu0 0.0
      %659 = vmatpush1.msra.mxu0 %v630
      %660 = vmatprep.subr.mxu0 0.0
      %661 = vmatpush1.msra.mxu0 %v631
      %662 = vmatprep.subr.mxu0 0.0
      %663 = vmatpush1.msra.mxu0 %v632
      %664 = vmatprep.subr.mxu0 0.0
      %665 = vmatpush1.msra.mxu0 %v633
      %666 = vmatprep.subr.mxu0 0.0
      %667 = vmatpush1.msra.mxu0 %v634
      %668 = vmatprep.subr.mxu0 0.0
      %669 = vmatpush1.msra.mxu0 %v635
      %670 = vmatprep.subr.mxu0 0.0
      %671 = vmatpush1.msra.mxu0 %v636
      %672 = vmatprep.subr.mxu0 0.0
      %673 = vmatpush1.msra.mxu0 %v637
      %674 = vmatprep.subr.mxu0 0.0
      %675 = vmatpush1.msra.mxu0 %v638
      %676 = vmatprep.subr.mxu0 0.0
      %677 = vmatpush1.msra.mxu0 %v639
      %678 = vmatprep.subr.mxu0 0.0
      %679 = vmatpush1.msra.mxu0 %v640
      %680 = vmatprep.subr.mxu0 0.0
      %681 = vmatpush1.msra.mxu0 0.0
      %682 = vmatprep.subr.mxu0 0.0
      %683 = vmatpush1.msra.mxu0 0.0
      %684 = vmatprep.subr.mxu0 0.0
      %685 = vmatpush1.msra.mxu0 0.0
      %686 = vmatprep.subr.mxu0 0.0
      %687 = vmatpush1.msra.mxu0 0.0
      %688 = vmatprep.subr.mxu0 0.0
      %689 = vmatpush1.msra.mxu0 0.0
      %690 = vmatprep.subr.mxu0 0.0
      %691 = vmatpush1.msra.mxu0 0.0
      %692 = vmatprep.subr.mxu0 0.0
      %693 = vmatpush1.msra.mxu0 0.0
      %694 = vmatprep.subr.mxu0 0.0
      %695 = vmatpush1.msra.mxu0 0.0
      %696 = vmatprep.subr.mxu0 0.0
      %697 = vmatpush1.msra.mxu0 0.0
      %698 = vmatprep.subr.mxu0 0.0
      %699 = vmatpush1.msra.mxu0 0.0
      %700 = vmatprep.subr.mxu0 0.0
      %701 = vmatpush1.msra.mxu0 0.0
      %702 = vmatprep.subr.mxu0 0.0
      %703 = vmatpush1.msra.mxu0 0.0
      %704 = vmatprep.subr.mxu0 0.0
      %705 = vmatpush1.msra.mxu0 0.0
      %706 = vmatprep.subr.mxu0 0.0
      %707 = vmatpush1.msra.mxu0 0.0
      %708 = vmatprep.subr.mxu0 0.0
      %709 = vmatpush1.msra.mxu0 0.0
      %710 = vmatprep.subr.mxu0 0.0
      %711 = vmatpush1.msra.mxu0 0.0
      %712 = vmatprep.mubr.f32.mxu0 0.0
      %713 = vmatmul.mubr.f32.gmra.mrb[0].mxu0 %v624
      %v714 = vpop.f32.mrb[0].mxu0
      %v715 = vadd.f32 %v646, %v714
      %v716 = vpop.f32.mrb[0].mxu0
      %717 = vdwg.mxu0
      %v718 = vmax.f32 %v715, 0.0
      %v719 = vld [vmem:[#allocation24] sm:$0x1]
      %v721 = vlaneseq
      %v722 = vshrl.u32 %v721, 7
      %v723 = vsub.s32 0, %v722
      %v724 = vrot.slane %v719, %v723
      %v726 = vmul.f32 %v718, %v724
      %vm727 = vcmask 1043456
      %v728 = vsel %vm727, %v726, 0.0
      %729 = vadd.xlane.f32.xlu0 %v728
      %v730 = vpop.xlane.xlu0 %729
      %v731 = vld [vmem:[#allocation6] sm:$0x1]
      %v733 = vlaneseq
      %v734 = vshrl.u32 %v733, 7
      %v735 = vsub.s32 0, %v734
      %v736 = vrot.slane %v731, %v735
      %v738 = vadd.f32 %v730, %v736
      %v739 = vxor.u32 %v738, 2147483648
      %v740 = vmul.f32 %v739, 1.442695
      %v741 = vpow.pop %v740
      %v742 = vadd.f32 %v741, 1.0
      %v743 = vrcp.pop %v742
      %v744 = vmul.f32 1.0, %v743
      %746 = vset.pattern.permute.xlu0 0
      %747 = vperm.xlu0 %746, %v744
      %v748 = vpop.permute.xlu0 %747
      %750 = vst [vmem:[#allocation26] sm:$0x3] %v748
      %s751 = scalar_lea.vmem [#allocation26], 2
      %752 = vst [vmem:[%s751 - $0x2] sm:$0xc] %v748
    $region105: #{tpu_custom_call.1} parent=1 // pred_fallthru
      _
    // Predicated region
    $region106: #{tpu_custom_call.1} parent=1 // pred_check
      _
    $region107: #{tpu_custom_call.1} parent=1 // pred_check_branch
      %754 = sbr.rel (0) target = $region109
    $region108: #{tpu_custom_call.1} parent=1 // pred_region
      %s756 = ssub.s32 64, 64
      %757 = vsyncadd [#allocation9], %s756
      %s758 = sshll.u32 [#allocation25], 4
      %s759 = int_to_ptr.vmem [resolvable:$true] %s758
      %764 = dma.vmem_to_hbm [thread:$0]  %s759, 64, %s13, [#allocation9], 32, 32, 2
    $region109: #{tpu_custom_call.1} parent=1 // pred_fallthru
      _
    // Predicated region
    $region110: #{tpu_custom_call.1} parent=1 // pred_check
      _
    $region111: #{tpu_custom_call.1} parent=1 // pred_check_branch
      %766 = sbr.rel (0) target = $region113
    $region112: #{tpu_custom_call.1} parent=1 // pred_region
      %s768 = ssub.s32 64, 64
      %769 = vsyncadd [#allocation27], %s768
      %s770 = sshll.u32 [#allocation26], 4
      %s771 = int_to_ptr.vmem [resolvable:$true] %s770
      %776 = dma.vmem_to_hbm [thread:$0]  %s771, 64, %s14, [#allocation27], 32, 32, 2
    $region113: #{tpu_custom_call.1} parent=1 // pred_fallthru
      _
    // Predicated region
    $region114: #{tpu_custom_call.1} parent=1 // pred_check
      _
    $region115: #{tpu_custom_call.1} parent=1 // pred_check_branch
      %778 = sbr.rel (0) target = $region117
    $region116: #{tpu_custom_call.1} parent=1 // pred_region
      %779 = dma.done [#allocation9], 64
    $region117: #{tpu_custom_call.1} parent=1 // pred_fallthru
      _
    // Predicated region
    $region118: #{tpu_custom_call.1} parent=1 // pred_check
      _
    $region119: #{tpu_custom_call.1} parent=1 // pred_check_branch
      %781 = sbr.rel (0) target = $region121
    $region120: #{tpu_custom_call.1} parent=1 // pred_region
      %782 = dma.done [#allocation27], 64
    $region121: #{tpu_custom_call.1} parent=1 // pred_fallthru
      _
    %783 = vsyncpa [#allocation8], 1
    %784 = vsyncpa [#allocation11], 1
    %785 = vsyncpa [#allocation14], 1
    %786 = vsyncpa [#allocation17], 1
    %787 = vsyncpa [#allocation20], 1
    %788 = vsyncpa [#allocation23], 1
    %789 = vsyncpa [#allocation9], 1
    %790 = vsyncpa [#allocation27], 1

</llo_original>
